<compile_context>
chip_gen: v7x
topology: tpu7x:2x2x1
jax: 0.10.0
libtpu: 0.0.40
codegen_flags: <defaults>
</compile_context>

<pallas_src>
import functools

import jax
import jax.numpy as jnp
from jax import lax
from jax.experimental import pallas as pl
from jax.experimental.pallas import tpu as pltpu

_LANES = 128
_MAX_TILE_ROWS = 4096   # (4096,128) f32 block = 2 MiB; 2 streams x 2 bufs = 8 MiB VMEM
_STRIP_ROWS = 64        # inner accumulation strip = 8 f32 vregs per stream


def _bias_partial_kernel(x_ref, t_ref, o_ref, *, n_valid, tile_rows,
                         strip_rows, edge_possible):
    """Per-block lane-dense partial sums.

    o_ref[0, 0:8, :]  += per-lane sum of sigmoid(x) over this block
    o_ref[0, 8:16, :] += per-lane sum of targets over this block
    """
    i = pl.program_id(0)
    n_strips = tile_rows // strip_rows

    # Validity expressed as (full rows, remaining lanes) so the comparison
    # never multiplies by 128 in int32 (safe up to 2**31 rows of data).
    valid_full_rows = n_valid // _LANES
    valid_rem_lanes = n_valid % _LANES

    def edge_mask(r0, shape):
        row_ids = lax.broadcasted_iota(jnp.int32, shape, 0)
        lane_ids = lax.broadcasted_iota(jnp.int32, shape, 1)
        grow = i * tile_rows + r0 + row_ids
        return (grow < valid_full_rows) | (
            (grow == valid_full_rows) & (lane_ids < valid_rem_lanes))

    def block_sums(mask_fn):
        def body(j, carry):
            s_acc, t_acc = carry
            r0 = pl.multiple_of(j * strip_rows, strip_rows)
            xs = x_ref[pl.ds(r0, strip_rows), :].astype(jnp.float32)
            ts = t_ref[pl.ds(r0, strip_rows), :].astype(jnp.float32)
            # One EUP push per vreg: sigmoid(x) = 0.5*tanh(x/2) + 0.5
            ss = 0.5 * jnp.tanh(0.5 * xs) + 0.5
            if mask_fn is not None:
                valid = mask_fn(r0, xs.shape)
                # Select (not multiply): padded-region garbage must not leak.
                ss = jnp.where(valid, ss, 0.0)
                ts = jnp.where(valid, ts, 0.0)
            s_acc = s_acc + ss.reshape(strip_rows // 8, 8, _LANES).sum(axis=0)
            t_acc = t_acc + ts.reshape(strip_rows // 8, 8, _LANES).sum(axis=0)
            return s_acc, t_acc

        init = (jnp.zeros((8, _LANES), jnp.float32),
                jnp.zeros((8, _LANES), jnp.float32))
        return lax.fori_loop(0, n_strips, body, init, unroll=True)

    def write(sums):
        s8, t8 = sums
        o_ref[0, 0:8, :] = s8
        o_ref[0, 8:16, :] = t8

    if not edge_possible:
        # Statically known: every block is fully valid.
        write(block_sums(None))
    else:
        # Only the last block can contain the valid/padded boundary.
        @pl.when(i != pl.num_programs(0) - 1)
        def _():
            write(block_sums(None))

        @pl.when(i == pl.num_programs(0) - 1)
        def _():
            write(block_sums(edge_mask))


@jax.jit
def bias_loss(inputs, targets, smooth=1.0):
    """Matches BIASLoss.forward(inputs, targets, smooth)."""
    x = inputs.reshape(-1)          # keep native dtype; cast in-kernel
    t = targets.reshape(-1)
    n = x.shape[0]

    # Pad only to a lane multiple (no-op whenever n % 128 == 0, the common
    # case); partial last block / partial last row are handled by the
    # in-kernel boundary mask.
    rows = -(-n // _LANES)
    lane_pad = rows * _LANES - n
    if lane_pad:
        x = jnp.pad(x, (0, lane_pad))
        t = jnp.pad(t, (0, lane_pad))
    x2 = x.reshape(rows, _LANES)
    t2 = t.reshape(rows, _LANES)

    # Tile rows ≈ rows/2 (rounded to the strip size) so the "parallel" grid
    # axis has >= 2 steps for mid-sized inputs (v7x 2-TC sharding), capped at
    # _MAX_TILE_ROWS; tiny inputs become a single small block.
    rows8 = ((rows + 7) // 8) * 8
    if rows8 <= _STRIP_ROWS:
        tile_rows = rows8
        strip_rows = rows8
    else:
        half = -(-rows8 // 2)
        tile_rows = min(
            _MAX_TILE_ROWS,
            ((half + _STRIP_ROWS - 1) // _STRIP_ROWS) * _STRIP_ROWS)
        strip_rows = _STRIP_ROWS

    grid = (pl.cdiv(rows, tile_rows),)
    edge_possible = (grid[0] * tile_rows * _LANES) != n

    tile_spec = pl.BlockSpec((tile_rows, _LANES), lambda i: (i, 0))
    kernel = functools.partial(
        _bias_partial_kernel, n_valid=n, tile_rows=tile_rows,
        strip_rows=strip_rows, edge_possible=edge_possible)

    partials = pl.pallas_call(
        kernel,
        out_shape=jax.ShapeDtypeStruct((grid[0], 16, _LANES), jnp.float32),
        grid_spec=pltpu.PrefetchScalarGridSpec(
            num_scalar_prefetch=0,
            grid=grid,
            in_specs=[tile_spec, tile_spec],
            out_specs=pl.BlockSpec((1, 16, _LANES), lambda i: (i, 0, 0)),
        ),
        compiler_params=pltpu.CompilerParams(
            dimension_semantics=("parallel",)),
    )(x2, t2)

    sig_sum = jnp.sum(partials[:, 0:8, :])
    tgt_sum = jnp.sum(partials[:, 8:16, :])
    bias = sig_sum / tgt_sum
    return jnp.abs(bias - smooth)


def _bias_loss_ref(inputs, targets, smooth=1.0):
    p = jax.nn.sigmoid(inputs.reshape(-1).astype(jnp.float32))
    t = targets.reshape(-1).astype(jnp.float32)
    return jnp.abs(jnp.sum(p) / jnp.sum(t) - smooth)


if __name__ == "__main__":
    key = jax.random.PRNGKey(0)
    k1, k2, k3, k4 = jax.random.split(key, 4)

    # Small segmentation-style NCHW logits / binary targets (lane-aligned).
    x = jax.random.normal(k1, (2, 4, 16, 16), dtype=jnp.float32)
    t = (jax.random.uniform(k2, (2, 4, 16, 16)) > 0.5).astype(jnp.float32)
    out = bias_loss(x, t)
    jax.block_until_ready(out)
    ref = _bias_loss_ref(x, t)
    assert jnp.allclose(out, ref, rtol=1e-4, atol=1e-5), (out, ref)

    # Non-128-multiple size to exercise the masked boundary-block path.
    x2 = jax.random.normal(k3, (3, 5, 7, 11), dtype=jnp.float32)
    t2 = (jax.random.uniform(k4, (3, 5, 7, 11)) > 0.5).astype(jnp.float32)
    out2 = bias_loss(x2, t2)
    jax.block_until_ready(out2)
    ref2 = _bias_loss_ref(x2, t2)
    assert jnp.allclose(out2, ref2, rtol=1e-4, atol=1e-5), (out2, ref2)

    print("KERNEL_OK")
</pallas_src>

<mosaic_0001>
module attributes {stable_mosaic.version = 11 : i64} {
  func.func @_bias_partial_kernel(%arg0: i32, %arg1: memref<16x128xf32, #tpu.memory_space<vmem>>, %arg2: memref<16x128xf32, #tpu.memory_space<vmem>>, %arg3: memref<1x16x128xf32, #tpu.memory_space<vmem>>) attributes {dimension_semantics = [#tpu.dimension_semantics<parallel>], iteration_bounds = array<i64: 1>, scalar_prefetch = 0 : i64, scratch_operands = 0 : i64, tpu.core_type = #tpu.core_type<tc>, window_params = [{transform_indices = @transform_0, window_bounds = array<i64: 16, 128>}, {transform_indices = @transform_1, window_bounds = array<i64: 16, 128>}, {transform_indices = @transform_2, window_bounds = array<i64: 1, 16, 128>}]} {
    %cst = arith.constant 0.000000e+00 : f32
    %0 = vector.broadcast %cst : f32 to vector<8x128xf32>
    %cst_0 = arith.constant 0.000000e+00 : f32
    %1 = vector.broadcast %cst_0 : f32 to vector<8x128xf32>
    %c0_i32 = arith.constant 0 : i32
    %c16_i32 = arith.constant 16 : i32
    %2 = arith.muli %c0_i32, %c16_i32 : i32
    %3 = tpu.assume_multiple %2, 16 : i32
    %4 = arith.index_cast %3 : i32 to index
    %c0 = arith.constant 0 : index
    %5 = vector.load %arg1[%4, %c0] : memref<16x128xf32, #tpu.memory_space<vmem>>, vector<16x128xf32>
    %6 = arith.index_cast %3 : i32 to index
    %c0_1 = arith.constant 0 : index
    %7 = vector.load %arg2[%6, %c0_1] : memref<16x128xf32, #tpu.memory_space<vmem>>, vector<16x128xf32>
    %cst_2 = arith.constant 5.000000e-01 : f32
    %8 = vector.broadcast %cst_2 : f32 to vector<16x128xf32>
    %9 = arith.mulf %8, %5 : vector<16x128xf32>
    %10 = math.tanh %9 : vector<16x128xf32>
    %cst_3 = arith.constant 5.000000e-01 : f32
    %11 = vector.broadcast %cst_3 : f32 to vector<16x128xf32>
    %12 = arith.mulf %11, %10 : vector<16x128xf32>
    %cst_4 = arith.constant 5.000000e-01 : f32
    %13 = vector.broadcast %cst_4 : f32 to vector<16x128xf32>
    %14 = arith.addf %12, %13 : vector<16x128xf32>
    %15 = vector.shape_cast %14 : vector<16x128xf32> to vector<2x8x128xf32>
    %cst_5 = arith.constant dense<0.000000e+00> : vector<8x128xf32>
    %16 = vector.multi_reduction <add>, %15, %cst_5 [0] : vector<2x8x128xf32> to vector<8x128xf32>
    %17 = arith.addf %0, %16 : vector<8x128xf32>
    %18 = vector.shape_cast %7 : vector<16x128xf32> to vector<2x8x128xf32>
    %cst_6 = arith.constant dense<0.000000e+00> : vector<8x128xf32>
    %19 = vector.multi_reduction <add>, %18, %cst_6 [0] : vector<2x8x128xf32> to vector<8x128xf32>
    %20 = arith.addf %1, %19 : vector<8x128xf32>
    %c1_i32 = arith.constant 1 : i32
    %c0_7 = arith.constant 0 : index
    %c0_8 = arith.constant 0 : index
    %c0_9 = arith.constant 0 : index
    %21 = vector.load %arg3[%c0_7, %c0_8, %c0_9] : memref<1x16x128xf32, #tpu.memory_space<vmem>>, vector<1x8x128xf32>
    %22 = vector.shape_cast %21 : vector<1x8x128xf32> to vector<8x128xf32>
    %23 = vector.shape_cast %17 : vector<8x128xf32> to vector<1x8x128xf32>
    tpu.vector_store %arg3[%c0_7, %c0_8, %c0_9], %23 {strides = array<i32>} : memref<1x16x128xf32, #tpu.memory_space<vmem>>, vector<1x8x128xf32>,
    %c0_10 = arith.constant 0 : index
    %c8 = arith.constant 8 : index
    %c0_11 = arith.constant 0 : index
    %24 = vector.load %arg3[%c0_10, %c8, %c0_11] : memref<1x16x128xf32, #tpu.memory_space<vmem>>, vector<1x8x128xf32>
    %25 = vector.shape_cast %24 : vector<1x8x128xf32> to vector<8x128xf32>
    %26 = vector.shape_cast %20 : vector<8x128xf32> to vector<1x8x128xf32>
    tpu.vector_store %arg3[%c0_10, %c8, %c0_11], %26 {strides = array<i32>} : memref<1x16x128xf32, #tpu.memory_space<vmem>>, vector<1x8x128xf32>,
    return
  }
  func.func @transform_0(%arg0: i32) -> (i32, i32) {
    %c0_i32 = arith.constant 0 : i32
    %c0_i32_0 = arith.constant 0 : i32
    return %arg0, %c0_i32 : i32, i32
  }
  func.func @transform_1(%arg0: i32) -> (i32, i32) {
    %c0_i32 = arith.constant 0 : i32
    %c0_i32_0 = arith.constant 0 : i32
    return %arg0, %c0_i32 : i32, i32
  }
  func.func @transform_2(%arg0: i32) -> (i32, i32, i32) {
    %c0_i32 = arith.constant 0 : i32
    %c0_i32_0 = arith.constant 0 : i32
    %c0_i32_1 = arith.constant 0 : i32
    return %arg0, %c0_i32, %c0_i32_0 : i32, i32, i32
  }
}

</mosaic_0001>

<llo_original>
// kernel: bias_loss.1
$region0: #{bias_loss.1}
  #allocation0 [shape = 'u32[]', space=smem, size = 0x4, offset = 0x4, fixed_abs, tag = 'smem constant byte address 0x4 - core index']
  #allocation1 [shape = 'u32[144,128]{1,0:T(1,128)}', space=vmem, size = 0x12000, scoped, tag = 'internal scratch']
  %s0 = inlined_call_operand.vmem [shape: f32[16,128], index: 0, kind: input, shape index: {}]
  %s1 = inlined_call_operand.vmem [shape: f32[16,128], index: 1, kind: input, shape index: {}]
  %s2 = inlined_call_operand.vmem [shape: f32[1,16,128], index: 2, kind: output, shape index: {}]
  %s3 = sld [smem:[#allocation0]]
  $region18: #{bias_loss.1} parent=0
    _
  %s5 = ssub.s32 1, %s3
  %s6 = scalar_select 0, %s5, %s3
  // Predicated region
  $region2: #{bias_loss.1} parent=0 // pred_check
    _
  $region3: #{bias_loss.1} parent=0 // pred_check_branch
    %8 = sbr.rel (0) target = $region5
  $region4: #{bias_loss.1} parent=0 // pred_region
    _
  $region5: #{bias_loss.1} parent=0 // pred_fallthru
    _
  // Predicated region
  $region6: #{bias_loss.1} parent=0 // pred_check
    _
  $region7: #{bias_loss.1} parent=0 // pred_check_branch
    %10 = sbr.rel (0) target = $region9
  $region8: #{bias_loss.1} parent=0 // pred_region
    _
  $region9: #{bias_loss.1} parent=0 // pred_fallthru
    _
  %v11 = vld [vmem:[%s0] sm:$0xff]
  %v12 = vld [vmem:[%s0 + $0x8] sm:$0xff]
  %v13 = vld [vmem:[%s1] sm:$0xff]
  %v14 = vld [vmem:[%s1 + $0x8] sm:$0xff]
  %v15 = vmul.f32 %v11, 0.5
  %v16 = vmul.f32 %v12, 0.5
  %v17 = vtanh.pop %v15
  %v18 = vtanh.pop %v16
  %v19 = vmul.f32 %v17, 0.5
  %v20 = vmul.f32 %v18, 0.5
  %v21 = vadd.f32 %v19, 0.5
  %v22 = vadd.f32 %v20, 0.5
  %v23 = vadd.f32 %v21, %v22
  %v24 = vadd.f32 %v23, 0.0
  %v25 = vadd.f32 %v13, %v14
  %v26 = vadd.f32 %v25, 0.0
  %27 = vst [vmem:[%s2] sm:$0xff] %v24
  %28 = vst [vmem:[%s2 + $0x8] sm:$0xff] %v26
  // Predicated region
  $region10: #{bias_loss.1} parent=0 // pred_check
    _
  $region11: #{bias_loss.1} parent=0 // pred_check_branch
    %30 = sbr.rel (0) target = $region13
  $region12: #{bias_loss.1} parent=0 // pred_region
    _
  $region13: #{bias_loss.1} parent=0 // pred_fallthru
    _
  // Predicated region
  $region14: #{bias_loss.1} parent=0 // pred_check
    _
  $region15: #{bias_loss.1} parent=0 // pred_check_branch
    %32 = sbr.rel (0) target = $region17
  $region16: #{bias_loss.1} parent=0 // pred_region
    _
  $region17: #{bias_loss.1} parent=0 // pred_fallthru
    _

</llo_original>
